<compile_context>
chip_gen: v7x
topology: tpu7x:2x2x1
jax: 0.10.0
libtpu: 0.0.40
codegen_flags: <defaults>
</compile_context>

<pallas_src>
import jax
import jax.numpy as jnp
import numpy as np
from jax.experimental import pallas as pl
from jax.experimental.pallas import tpu as pltpu

_LANE = 128
_SUBLANE = 8
_N_SPLITS = 2                              # core-parallel splits (both TCs on v7x)
_TARGET_BLOCK_BYTES = 2 * 1024 * 1024      # ~2 MiB per input block (x2 inputs x2 bufs = 8 MiB)


def _round_up(x: int, m: int) -> int:
    return (x + m - 1) // m * m


def _rowgroup_sum_f32(x):
    """(rt, cp) f32 with rt % 8 == 0 -> (8, cp): sum over groups of 8 rows.

    Static, sublane-aligned slices + adds: pure VPU work, no XLU cross-lane reduce.
    """
    rt = x.shape[0]
    acc = x[0:_SUBLANE, :]
    for g in range(1, rt // _SUBLANE):
        acc = acc + x[g * _SUBLANE:(g + 1) * _SUBLANE, :]
    return acc


def _loss_kernel_weighted(w_ref, p_ref, t_ref, out_ref):
    i = pl.program_id(1)

    @pl.when(i == 0)
    def _():
        out_ref[...] = jnp.zeros_like(out_ref)

    # Cast each operand to f32 BEFORE the subtract (matches f32 reference math
    # even for bf16 inputs).  thetaw*pred - thetaw*target == thetaw*(pred-target).
    p = p_ref[...].astype(jnp.float32)
    t = t_ref[...].astype(jnp.float32)
    d = w_ref[...] * (p - t)               # (1, cp) broadcasts over rows; w is f32
    sq = d * d
    out_ref[...] += _rowgroup_sum_f32(sq)[None, :, :]


def _loss_kernel_plain(p_ref, t_ref, out_ref):
    i = pl.program_id(1)

    @pl.when(i == 0)
    def _():
        out_ref[...] = jnp.zeros_like(out_ref)

    p = p_ref[...].astype(jnp.float32)
    t = t_ref[...].astype(jnp.float32)
    d = p - t
    sq = d * d
    out_ref[...] += _rowgroup_sum_f32(sq)[None, :, :]


def embedding_loss(pred, target, thetaw, use_thetaw=True,
                   block_bytes=_TARGET_BLOCK_BYTES):
    """mean((thetaw*pred - thetaw*target)**2) (or plain MSE if use_thetaw=False)."""
    B, C, E, W = pred.shape
    rows, cols = B * C, E * W
    n_total = float(B * C * E * W)

    cols_p = _round_up(cols, _LANE)
    itemsize = jnp.dtype(pred.dtype).itemsize

    # Row tile: multiple of 8, ~block_bytes per input block, never bigger than one
    # split's worth of rows.  (Fits double-buffered in the 16/32 MiB scoped-VMEM
    # budget on v5e/v6e/v7x.)
    row_tile_budget = max(
        _SUBLANE, (block_bytes // (cols_p * itemsize)) // _SUBLANE * _SUBLANE)
    n_splits = _N_SPLITS
    row_tile = min(row_tile_budget,
                   _round_up(pl.cdiv(rows, n_splits), _SUBLANE))
    if _round_up(rows, _SUBLANE) <= row_tile:
        # Whole problem fits in one tile: drop the core split so we neither read
        # a block of pure zero padding nor pay an extra grid level.
        n_splits = 1
        row_tile = _round_up(rows, _SUBLANE)

    rows_p = _round_up(rows, n_splits * row_tile)
    tiles_per_split = rows_p // (n_splits * row_tile)

    p2 = pred.reshape(rows, cols)
    t2 = target.reshape(rows, cols)
    if rows_p != rows or cols_p != cols:
        # TODO(synk): remainder handling via in-kernel masking would avoid this
        # full HBM copy for unaligned shapes; zero-pad keeps the sum exact.
        pad = ((0, rows_p - rows), (0, cols_p - cols))
        p2 = jnp.pad(p2, pad)              # zero-padded elements contribute 0 to the sum
        t2 = jnp.pad(t2, pad)

    grid = (n_splits, tiles_per_split)
    out_shape = jax.ShapeDtypeStruct((n_splits, _SUBLANE, cols_p), jnp.float32)
    data_specs = [
        pl.BlockSpec((row_tile, cols_p), lambda c, i: (c * tiles_per_split + i, 0)),
        pl.BlockSpec((row_tile, cols_p), lambda c, i: (c * tiles_per_split + i, 0)),
    ]
    out_spec = pl.BlockSpec((1, _SUBLANE, cols_p), lambda c, i: (c, 0, 0))
    cparams = pltpu.CompilerParams(
        dimension_semantics=("parallel", "arbitrary"),
        vmem_limit_bytes=32 * 1024 * 1024,
    )

    if use_thetaw:
        # thetaw has shape (1,1,E,1): weight depends only on E; fold into a lane-dense f32 row.
        w_row = jnp.broadcast_to(
            thetaw.reshape(E, 1).astype(jnp.float32), (E, W)).reshape(1, cols)
        if cols_p != cols:
            w_row = jnp.pad(w_row, ((0, 0), (0, cols_p - cols)))
        partial = pl.pallas_call(
            _loss_kernel_weighted,
            out_shape=out_shape,
            grid_spec=pltpu.PrefetchScalarGridSpec(
                num_scalar_prefetch=0,
                grid=grid,
                in_specs=[pl.BlockSpec((1, cols_p), lambda c, i: (0, 0))] + data_specs,
                out_specs=out_spec,
            ),
            compiler_params=cparams,
        )(w_row, p2, t2)
    else:
        partial = pl.pallas_call(
            _loss_kernel_plain,
            out_shape=out_shape,
            grid_spec=pltpu.PrefetchScalarGridSpec(
                num_scalar_prefetch=0,
                grid=grid,
                in_specs=data_specs,
                out_specs=out_spec,
            ),
            compiler_params=cparams,
        )(p2, t2)

    # Tiny epilogue in plain JAX: add the per-core partial blocks and normalize.
    return jnp.sum(partial) / jnp.float32(n_total)


def embedding_loss_ref(pred, target, thetaw, use_thetaw=True):
    if use_thetaw:
        pred = thetaw * pred
        target = thetaw * target
    return jnp.mean((pred - target) ** 2)


if __name__ == "__main__":
    key = jax.random.PRNGKey(0)

    def run_case(B, C, E, W, block_bytes=_TARGET_BLOCK_BYTES):
        # Deterministic frozen parameter, same formula as the PyTorch __init__.
        thetaw = jnp.sin(jnp.linspace(0.0, np.pi, E, dtype=jnp.float32)).reshape(1, 1, E, 1)
        kp, kt = jax.random.split(jax.random.fold_in(key, B * 1000 + C * 100 + E * 10 + W))
        pred = jax.random.normal(kp, (B, C, E, W), dtype=jnp.float32)
        target = jax.random.normal(kt, (B, C, E, W), dtype=jnp.float32)
        for use_thetaw in (True, False):
            loss = jax.block_until_ready(
                embedding_loss(pred, target, thetaw, use_thetaw, block_bytes=block_bytes))
            ref = embedding_loss_ref(pred, target, thetaw, use_thetaw)
            assert np.allclose(np.asarray(loss), np.asarray(ref), rtol=1e-5, atol=1e-6), \
                (B, C, E, W, use_thetaw, float(loss), float(ref))

    # Primary small shape consistent with the module: (B, C, embedding_dim, W).
    # Fits a single tile -> single-split fast path, no padding at all.
    run_case(2, 4, 16, 16)
    # Unaligned shape exercises the zero-pad remainder path (rows/cols not tile-aligned).
    run_case(2, 3, 10, 7)
    # Larger aligned shape exercises the 2-way core split.
    run_case(4, 64, 16, 16)
    # Small block budget forces multiple row tiles per split -> exercises the
    # output-resident accumulator (pl.when(i==0) init + += across grid axis 1).
    run_case(4, 16, 16, 16, block_bytes=16 * 1024)

    print("KERNEL_OK")
</pallas_src>

<mosaic_0001>
module attributes {stable_mosaic.version = 11 : i64} {
  func.func @_loss_kernel_weighted(%arg0: i32, %arg1: i32, %arg2: memref<1x256xf32, #tpu.memory_space<vmem>>, %arg3: memref<8x256xf32, #tpu.memory_space<vmem>>, %arg4: memref<8x256xf32, #tpu.memory_space<vmem>>, %arg5: memref<1x8x256xf32, #tpu.memory_space<vmem>>) attributes {dimension_semantics = [#tpu.dimension_semantics<parallel>, #tpu.dimension_semantics<arbitrary>], iteration_bounds = array<i64: 1, 1>, scalar_prefetch = 0 : i64, scratch_operands = 0 : i64, tpu.core_type = #tpu.core_type<tc>, window_params = [{pipeline_mode = #tpu.pipeline_mode<synchronous>, transform_indices = @transform_0, window_bounds = array<i64: 1, 256>}, {transform_indices = @transform_1, window_bounds = array<i64: 8, 256>}, {transform_indices = @transform_2, window_bounds = array<i64: 8, 256>}, {transform_indices = @transform_3, window_bounds = array<i64: 1, 8, 256>}]} {
    %c0_i32 = arith.constant 0 : i32
    %0 = arith.cmpi eq, %arg1, %c0_i32 : i32
    %1 = arith.extui %0 : i1 to i32
    %c0_i32_0 = arith.constant 0 : i32
    %2 = arith.cmpi ne, %1, %c0_i32_0 : i32
    scf.if %2 {
      %cst = arith.constant 0.000000e+00 : f32
      %14 = vector.broadcast %cst : f32 to vector<1x8x256xf32>
      %c0_12 = arith.constant 0 : index
      %c0_13 = arith.constant 0 : index
      %c0_14 = arith.constant 0 : index
      %15 = vector.load %arg5[%c0_12, %c0_13, %c0_14] : memref<1x8x256xf32, #tpu.memory_space<vmem>>, vector<1x8x256xf32>
      tpu.vector_store %arg5[%c0_12, %c0_13, %c0_14], %14 {strides = array<i32>} : memref<1x8x256xf32, #tpu.memory_space<vmem>>, vector<1x8x256xf32>,
    } else {
    }
    %c0 = arith.constant 0 : index
    %c0_1 = arith.constant 0 : index
    %3 = vector.load %arg3[%c0, %c0_1] : memref<8x256xf32, #tpu.memory_space<vmem>>, vector<8x256xf32>
    %c0_2 = arith.constant 0 : index
    %c0_3 = arith.constant 0 : index
    %4 = vector.load %arg4[%c0_2, %c0_3] : memref<8x256xf32, #tpu.memory_space<vmem>>, vector<8x256xf32>
    %c0_4 = arith.constant 0 : index
    %c0_5 = arith.constant 0 : index
    %5 = vector.load %arg2[%c0_4, %c0_5] : memref<1x256xf32, #tpu.memory_space<vmem>>, vector<1x256xf32>
    %6 = arith.subf %3, %4 : vector<8x256xf32>
    %7 = vector.broadcast %5 : vector<1x256xf32> to vector<8x256xf32>
    %8 = arith.mulf %7, %6 : vector<8x256xf32>
    %9 = arith.mulf %8, %8 : vector<8x256xf32>
    %c0_6 = arith.constant 0 : index
    %c0_7 = arith.constant 0 : index
    %c0_8 = arith.constant 0 : index
    %10 = vector.load %arg5[%c0_6, %c0_7, %c0_8] : memref<1x8x256xf32, #tpu.memory_space<vmem>>, vector<1x8x256xf32>
    %11 = vector.shape_cast %9 : vector<8x256xf32> to vector<1x8x256xf32>
    %12 = arith.addf %10, %11 : vector<1x8x256xf32>
    %c0_9 = arith.constant 0 : index
    %c0_10 = arith.constant 0 : index
    %c0_11 = arith.constant 0 : index
    %13 = vector.load %arg5[%c0_9, %c0_10, %c0_11] : memref<1x8x256xf32, #tpu.memory_space<vmem>>, vector<1x8x256xf32>
    tpu.vector_store %arg5[%c0_9, %c0_10, %c0_11], %12 {strides = array<i32>} : memref<1x8x256xf32, #tpu.memory_space<vmem>>, vector<1x8x256xf32>,
    return
  }
  func.func @transform_0(%arg0: i32, %arg1: i32) -> (i32, i32) {
    %c0_i32 = arith.constant 0 : i32
    %c0_i32_0 = arith.constant 0 : i32
    %c0_i32_1 = arith.constant 0 : i32
    return %c0_i32, %c0_i32_0 : i32, i32
  }
  func.func @transform_1(%arg0: i32, %arg1: i32) -> (i32, i32) {
    %c1_i32 = arith.constant 1 : i32
    %0 = arith.muli %arg0, %c1_i32 : i32
    %1 = arith.addi %0, %arg1 : i32
    %c0_i32 = arith.constant 0 : i32
    %c0_i32_0 = arith.constant 0 : i32
    return %1, %c0_i32 : i32, i32
  }
  func.func @transform_2(%arg0: i32, %arg1: i32) -> (i32, i32) {
    %c1_i32 = arith.constant 1 : i32
    %0 = arith.muli %arg0, %c1_i32 : i32
    %1 = arith.addi %0, %arg1 : i32
    %c0_i32 = arith.constant 0 : i32
    %c0_i32_0 = arith.constant 0 : i32
    return %1, %c0_i32 : i32, i32
  }
  func.func @transform_3(%arg0: i32, %arg1: i32) -> (i32, i32, i32) {
    %c0_i32 = arith.constant 0 : i32
    %c0_i32_0 = arith.constant 0 : i32
    %c0_i32_1 = arith.constant 0 : i32
    return %arg0, %c0_i32, %c0_i32_0 : i32, i32, i32
  }
}

</mosaic_0001>

<llo_original>
// kernel: tpu_custom_call.1
$region0: #{tpu_custom_call.1}
  #allocation0 [shape = 'u32[]', space=smem, size = 0x4, offset = 0x4, fixed_abs, tag = 'smem constant byte address 0x4 - core index']
  #allocation1 [shape = 'u32[144,128]{1,0:T(1,128)}', space=vmem, size = 0x12000, scoped, tag = 'internal scratch']
  %s0 = inlined_call_operand.hbm [shape: f32[1,256], index: 0, kind: input, shape index: {}]
  %s1 = inlined_call_operand.hbm [shape: f32[8,256], index: 1, kind: input, shape index: {}]
  %s2 = inlined_call_operand.hbm [shape: f32[8,256], index: 2, kind: input, shape index: {}]
  %s3 = inlined_call_operand.hbm [shape: f32[1,8,256], index: 3, kind: output, shape index: {}]
  %s4 = sld [smem:[#allocation0]]
  $region38: #{tpu_custom_call.1} parent=0
    _
  %s6 = ssub.s32 1, %s4
  %s7 = scalar_select 0, %s6, %s4
  $region1: #{tpu_custom_call.1} parent=0
    #allocation2 [shape = 'u8[1024]{0}', space=vmem, size = 0x400, scoped, tag = 'input window, operand 0, single buffered']
    #allocation3 [shape = 's32[1]{0}', space=sflag, size = 0x4, scoped, tag = 'scoped memory for tpu_custom_call.1']
    #allocation4 [shape = 's32[1]{0}', space=sflag, size = 0x4, scoped, tag = 'scoped memory for tpu_custom_call.1']
    #allocation5 [shape = 'u8[8192]{0}', space=vmem, size = 0x2000, scoped, tag = 'input window, operand 1, single buffered']
    #allocation6 [shape = 's32[1]{0}', space=sflag, size = 0x4, scoped, tag = 'scoped memory for tpu_custom_call.1']
    #allocation7 [shape = 'u8[8192]{0}', space=vmem, size = 0x2000, scoped, tag = 'input window, operand 2, single buffered']
    #allocation8 [shape = 'u8[8192]{0}', space=vmem, size = 0x2000, scoped, tag = 'output window, operand 0, single buffered']
    %8 = vsyncpa [#allocation3], 0
    %9 = vsyncpa [#allocation6], 0
    %10 = vsyncpa [#allocation4], 0
    // Predicated region
    $region2: #{tpu_custom_call.1} parent=1 // pred_check
      _
    $region3: #{tpu_custom_call.1} parent=1 // pred_check_branch
      %12 = sbr.rel (0) target = $region5
    $region4: #{tpu_custom_call.1} parent=1 // pred_region
      %s14 = ssub.s32 32, 32
      %15 = vsyncadd [#allocation3], %s14
      %s17 = sshll.u32 [#allocation2], 4
      %s18 = int_to_ptr.vmem [resolvable:$true] %s17
      %20 = dma.hbm_to_vmem [thread:$0]  %s0, 32, %s18, [#allocation3]
    $region5: #{tpu_custom_call.1} parent=1 // pred_fallthru
      _
    // Predicated region
    $region6: #{tpu_custom_call.1} parent=1 // pred_check
      _
    $region7: #{tpu_custom_call.1} parent=1 // pred_check_branch
      %22 = sbr.rel (0) target = $region9
    $region8: #{tpu_custom_call.1} parent=1 // pred_region
      %s23 = sadd.s32 0, 0
      %s25 = ssub.s32 256, 256
      %26 = vsyncadd [#allocation6], %s25
      %s27 = smul.addr %s23, 2
      %s28 = smul.addr %s27, 128
      %s29 = scalar_lea.hbm %s1, %s28
      %s31 = sshll.u32 [#allocation5], 4
      %s32 = int_to_ptr.vmem [resolvable:$true] %s31
      %34 = dma.hbm_to_vmem [thread:$0]  %s29, 256, %s32, [#allocation6]
    $region9: #{tpu_custom_call.1} parent=1 // pred_fallthru
      _
    // Predicated region
    $region10: #{tpu_custom_call.1} parent=1 // pred_check
      _
    $region11: #{tpu_custom_call.1} parent=1 // pred_check_branch
      %36 = sbr.rel (0) target = $region13
    $region12: #{tpu_custom_call.1} parent=1 // pred_region
      %s37 = sadd.s32 0, 0
      %s39 = ssub.s32 256, 256
      %40 = vsyncadd [#allocation6], %s39
      %s41 = smul.addr %s37, 2
      %s42 = smul.addr %s41, 128
      %s43 = scalar_lea.hbm %s2, %s42
      %s45 = sshll.u32 [#allocation7], 4
      %s46 = int_to_ptr.vmem [resolvable:$true] %s45
      %48 = dma.hbm_to_vmem [thread:$0]  %s43, 256, %s46, [#allocation6]
    $region13: #{tpu_custom_call.1} parent=1 // pred_fallthru
      _
    // Predicated region
    $region14: #{tpu_custom_call.1} parent=1 // pred_check
      _
    $region15: #{tpu_custom_call.1} parent=1 // pred_check_branch
      %50 = sbr.rel (0) target = $region17
    $region16: #{tpu_custom_call.1} parent=1 // pred_region
      %51 = dma.done [#allocation3], 32
    $region17: #{tpu_custom_call.1} parent=1 // pred_fallthru
      _
    // Predicated region
    $region18: #{tpu_custom_call.1} parent=1 // pred_check
      _
    $region19: #{tpu_custom_call.1} parent=1 // pred_check_branch
      %53 = sbr.rel (0) target = $region21
    $region20: #{tpu_custom_call.1} parent=1 // pred_region
      %54 = dma.done [#allocation6], 256
    $region21: #{tpu_custom_call.1} parent=1 // pred_fallthru
      _
    // Predicated region
    $region22: #{tpu_custom_call.1} parent=1 // pred_check
      _
    $region23: #{tpu_custom_call.1} parent=1 // pred_check_branch
      %56 = sbr.rel (0) target = $region25
    $region24: #{tpu_custom_call.1} parent=1 // pred_region
      %57 = dma.done [#allocation6], 256
    $region25: #{tpu_custom_call.1} parent=1 // pred_fallthru
      _
    %s58 = sadd.s32 0, 0
    %s59 = sadd.s32 0, 0
    %p60 = scmp.eq.s32.totalorder 0, 0
    // Predicated region
    $region26: #{tpu_custom_call.1} parent=1 // pred_check
      %p61 = pneg %p60
    $region27: #{tpu_custom_call.1} parent=1 // pred_check_branch
      %63 = sbr.rel (%p61) target = $region29
    $region28: #{tpu_custom_call.1} parent=1 // pred_region
      %64 = vst [vmem:[#allocation8] sm:$0xff] 0.0
      %65 = vst [vmem:[#allocation8 + $0x8] sm:$0xff] 0.0
    $region29: #{tpu_custom_call.1} parent=1 // pred_fallthru
      _
    %v66 = vld [vmem:[#allocation5] sm:$0xff]
    %v67 = vld [vmem:[#allocation5 + $0x8] sm:$0xff]
    %v68 = vld [vmem:[#allocation7] sm:$0xff]
    %v69 = vld [vmem:[#allocation7 + $0x8] sm:$0xff]
    %v70 = vld [vmem:[#allocation2] sm:$0x3]
    %v71 = vsub.f32 %v66, %v68
    %v72 = vsub.f32 %v67, %v69
    %v74 = vlaneseq
    %v75 = vshrl.u32 %v74, 7
    %v76 = vsub.s32 0, %v75
    %v77 = vrot.slane %v70, %v76
    %v78 = vlaneseq
    %v79 = vshrl.u32 %v78, 7
    %v80 = vsub.s32 1, %v79
    %v81 = vrot.slane %v70, %v80
    %v84 = vmul.f32 %v77, %v71
    %v85 = vmul.f32 %v81, %v72
    %v86 = vmul.f32 %v84, %v84
    %v87 = vmul.f32 %v85, %v85
    %v88 = vld [vmem:[#allocation8] sm:$0xff]
    %v89 = vld [vmem:[#allocation8 + $0x8] sm:$0xff]
    %v90 = vadd.f32 %v88, %v86
    %v91 = vadd.f32 %v89, %v87
    %92 = vst [vmem:[#allocation8] sm:$0xff] %v90
    %93 = vst [vmem:[#allocation8 + $0x8] sm:$0xff] %v91
    // Predicated region
    $region30: #{tpu_custom_call.1} parent=1 // pred_check
      _
    $region31: #{tpu_custom_call.1} parent=1 // pred_check_branch
      %95 = sbr.rel (0) target = $region33
    $region32: #{tpu_custom_call.1} parent=1 // pred_region
      %s97 = ssub.s32 256, 256
      %98 = vsyncadd [#allocation4], %s97
      %s100 = sshll.u32 [#allocation8], 4
      %s101 = int_to_ptr.vmem [resolvable:$true] %s100
      %103 = dma.vmem_to_hbm [thread:$0]  %s101, 256, %s3, [#allocation4]
    $region33: #{tpu_custom_call.1} parent=1 // pred_fallthru
      _
    // Predicated region
    $region34: #{tpu_custom_call.1} parent=1 // pred_check
      _
    $region35: #{tpu_custom_call.1} parent=1 // pred_check_branch
      %105 = sbr.rel (0) target = $region37
    $region36: #{tpu_custom_call.1} parent=1 // pred_region
      %106 = dma.done [#allocation4], 256
    $region37: #{tpu_custom_call.1} parent=1 // pred_fallthru
      _
    %107 = vsyncpa [#allocation3], 1
    %108 = vsyncpa [#allocation6], 1
    %109 = vsyncpa [#allocation4], 1

</llo_original>
